<compile_context>
chip_gen: v5e
topology: v5e:2x2
jax: 0.10.0
libtpu: 0.0.40
codegen_flags: <defaults>
</compile_context>

<pallas_src>
import jax
import jax.numpy as jnp
from jax.experimental import pallas as pl
from jax.experimental.pallas import tpu as pltpu

D_IN = 1000
D_IN_PAD = 1024          # K padded to a multiple of 128
D_H1, D_H2, D_H3 = 256, 64, 16
D_OUT = 3
D_OUT_PAD = 128          # lane-dense output width
_NEG_BIG = -1e30         # "minus infinity" bias for padded softmax columns


def _round_up(n, m):
    return -(-n // m) * m


def mlp_head_kernel(x_ref,
                    w1_ref, b1_ref,
                    w2_ref, b2_ref,
                    w3_ref, b3_ref,
                    w4_ref, b4_ref,
                    o_ref):
    x = x_ref[...]                                   # [TB, 1024] f32

    # fc1: bf16-stored weight, cast to f32, f32 accumulate. ReLU.
    w1 = w1_ref[...].astype(jnp.float32)
    h = jnp.dot(x, w1, preferred_element_type=jnp.float32) + b1_ref[...]
    h = jnp.maximum(h, 0.0)

    # fc2 + ReLU
    h = jnp.dot(h, w2_ref[...], preferred_element_type=jnp.float32) + b2_ref[...]
    h = jnp.maximum(h, 0.0)

    # fc3 + ReLU
    h = jnp.dot(h, w3_ref[...], preferred_element_type=jnp.float32) + b3_ref[...]
    h = jnp.maximum(h, 0.0)

    # fc4, padded to 128 output lanes. Padded columns have weight 0 and a huge
    # negative bias, so exp() underflows to exactly 0 and they do not perturb
    # the softmax over the 3 real columns.
    logits = jnp.dot(h, w4_ref[...], preferred_element_type=jnp.float32) + b4_ref[...]

    # Softmax over the feature (lane) axis.
    m = jnp.max(logits, axis=-1, keepdims=True)
    e = jnp.exp(logits - m)
    o_ref[...] = (e / jnp.sum(e, axis=-1, keepdims=True)).astype(o_ref.dtype)


def mlp_head(x, params, *, block_b=128):
    """x: [B, 1000] float32 features (resnext output). Returns [B, 3] softmax probs."""
    B = x.shape[0]
    (w1, b1), (w2, b2), (w3, b3), (w4, b4) = params

    # Batch tiling: sublane-aligned tile, batch padded to a multiple of it.
    tb = min(block_b, _round_up(B, 8))
    Bp = _round_up(B, tb)
    num_tiles = Bp // tb

    # Zero-pad x: batch B -> Bp, features 1000 -> 1024 (zeros contribute nothing).
    xp = jnp.zeros((Bp, D_IN_PAD), jnp.float32).at[:B, :D_IN].set(
        x.astype(jnp.float32))

    # w1 zero-padded on K and stored bf16 (dominant HBM traffic halved).
    w1p = jnp.zeros((D_IN_PAD, D_H1), jnp.float32).at[:D_IN, :].set(w1)
    w1p = w1p.astype(jnp.bfloat16)

    # fc4 padded to a lane-dense 128-wide output.
    w4p = jnp.zeros((D_H3, D_OUT_PAD), jnp.float32).at[:, :D_OUT].set(w4)
    b4p = jnp.full((1, D_OUT_PAD), _NEG_BIG, jnp.float32).at[0, :D_OUT].set(b4)

    args = (xp,
            w1p, b1.reshape(1, D_H1).astype(jnp.float32),
            w2.astype(jnp.float32), b2.reshape(1, D_H2).astype(jnp.float32),
            w3.astype(jnp.float32), b3.reshape(1, D_H3).astype(jnp.float32),
            w4p, b4p)

    # Explicit per-argument specs (no late-binding closure). Weights/biases are
    # resident across the batch grid (constant block index).
    in_specs = [
        pl.BlockSpec((tb, D_IN_PAD), lambda i: (i, 0)),        # x tile
        pl.BlockSpec((D_IN_PAD, D_H1), lambda i: (0, 0)),      # w1 (bf16)
        pl.BlockSpec((1, D_H1), lambda i: (0, 0)),             # b1
        pl.BlockSpec((D_H1, D_H2), lambda i: (0, 0)),          # w2
        pl.BlockSpec((1, D_H2), lambda i: (0, 0)),             # b2
        pl.BlockSpec((D_H2, D_H3), lambda i: (0, 0)),          # w3
        pl.BlockSpec((1, D_H3), lambda i: (0, 0)),             # b3
        pl.BlockSpec((D_H3, D_OUT_PAD), lambda i: (0, 0)),     # w4 (padded)
        pl.BlockSpec((1, D_OUT_PAD), lambda i: (0, 0)),        # b4 (padded)
    ]
    out_spec = pl.BlockSpec((tb, D_OUT_PAD), lambda i: (i, 0))

    flops = 2 * Bp * (D_IN_PAD * D_H1 + D_H1 * D_H2 + D_H2 * D_H3
                      + D_H3 * D_OUT_PAD)
    transcendentals = Bp * D_OUT_PAD                           # exp
    bytes_accessed = (sum(a.size * a.dtype.itemsize for a in args)
                      + Bp * D_OUT_PAD * 4)

    out = pl.pallas_call(
        mlp_head_kernel,
        out_shape=jax.ShapeDtypeStruct((Bp, D_OUT_PAD), jnp.float32),
        grid=(num_tiles,),
        in_specs=in_specs,
        out_specs=out_spec,
        compiler_params=pltpu.CompilerParams(
            dimension_semantics=("parallel",)),
        cost_estimate=pl.CostEstimate(
            flops=flops,
            transcendentals=transcendentals,
            bytes_accessed=bytes_accessed),
    )(*args)

    return out[:B, :D_OUT]


def init_params(key):
    """Deterministic init matching nn.Linear shapes (1000->256->64->16->3)."""
    dims = [(D_IN, D_H1), (D_H1, D_H2), (D_H2, D_H3), (D_H3, D_OUT)]
    params = []
    for i, (din, dout) in enumerate(dims):
        kw, kb = jax.random.split(jax.random.fold_in(key, i))
        bound = 1.0 / (din ** 0.5)
        w = jax.random.uniform(kw, (din, dout), jnp.float32, -bound, bound)
        b = jax.random.uniform(kb, (dout,), jnp.float32, -bound, bound)
        params.append((w, b))
    return params


def reference(x, params):
    """Pure-JAX reference. w1 is bf16-round-tripped to match the kernel's
    bf16 weight storage (perf optimization); all math is f32."""
    (w1, b1), (w2, b2), (w3, b3), (w4, b4) = params
    w1q = w1.astype(jnp.bfloat16).astype(jnp.float32)
    h = jnp.maximum(x @ w1q + b1, 0.0)
    h = jnp.maximum(h @ w2 + b2, 0.0)
    h = jnp.maximum(h @ w3 + b3, 0.0)
    return jax.nn.softmax(h @ w4 + b4, axis=1)


if __name__ == "__main__":
    key = jax.random.PRNGKey(0)
    kx, kp = jax.random.split(key)

    B = 8
    # x stands in for resnext101_32x8d(image) output features: [B, 1000]
    x = jax.random.normal(kx, (B, D_IN), jnp.float32)
    params = init_params(kp)

    out = jax.jit(mlp_head)(x, params)
    out = jax.block_until_ready(out)

    ref = reference(x, params)
    assert out.shape == (B, D_OUT)
    assert jnp.allclose(out, ref, atol=1e-5, rtol=1e-5), "mismatch vs reference"
    assert jnp.allclose(jnp.sum(out, axis=1), 1.0, atol=1e-5), \
        "softmax rows must sum to 1"

    print("KERNEL_OK")
</pallas_src>

<mosaic_0001>
module attributes {stable_mosaic.version = 11 : i64} {
  func.func @mlp_head_kernel(%arg0: i32, %arg1: memref<8x1024xf32, #tpu.memory_space<vmem>>, %arg2: memref<1024x256xbf16, #tpu.memory_space<vmem>>, %arg3: memref<1x256xf32, #tpu.memory_space<vmem>>, %arg4: memref<256x64xf32, #tpu.memory_space<vmem>>, %arg5: memref<1x64xf32, #tpu.memory_space<vmem>>, %arg6: memref<64x16xf32, #tpu.memory_space<vmem>>, %arg7: memref<1x16xf32, #tpu.memory_space<vmem>>, %arg8: memref<16x128xf32, #tpu.memory_space<vmem>>, %arg9: memref<1x128xf32, #tpu.memory_space<vmem>>, %arg10: memref<8x128xf32, #tpu.memory_space<vmem>>) attributes {dimension_semantics = [#tpu.dimension_semantics<parallel>], iteration_bounds = array<i64: 1>, scalar_prefetch = 0 : i64, scratch_operands = 0 : i64, tpu.core_type = #tpu.core_type<tc>, window_params = [{transform_indices = @transform_0, window_bounds = array<i64: 8, 1024>}, {pipeline_mode = #tpu.pipeline_mode<synchronous>, transform_indices = @transform_1, window_bounds = array<i64: 1024, 256>}, {pipeline_mode = #tpu.pipeline_mode<synchronous>, transform_indices = @transform_2, window_bounds = array<i64: 1, 256>}, {pipeline_mode = #tpu.pipeline_mode<synchronous>, transform_indices = @transform_3, window_bounds = array<i64: 256, 64>}, {pipeline_mode = #tpu.pipeline_mode<synchronous>, transform_indices = @transform_4, window_bounds = array<i64: 1, 64>}, {pipeline_mode = #tpu.pipeline_mode<synchronous>, transform_indices = @transform_5, window_bounds = array<i64: 64, 16>}, {pipeline_mode = #tpu.pipeline_mode<synchronous>, transform_indices = @transform_6, window_bounds = array<i64: 1, 16>}, {pipeline_mode = #tpu.pipeline_mode<synchronous>, transform_indices = @transform_7, window_bounds = array<i64: 16, 128>}, {pipeline_mode = #tpu.pipeline_mode<synchronous>, transform_indices = @transform_8, window_bounds = array<i64: 1, 128>}, {transform_indices = @transform_9, window_bounds = array<i64: 8, 128>}]} {
    %c0 = arith.constant 0 : index
    %c0_0 = arith.constant 0 : index
    %0 = vector.load %arg1[%c0, %c0_0] : memref<8x1024xf32, #tpu.memory_space<vmem>>, vector<8x1024xf32>
    %c0_1 = arith.constant 0 : index
    %c0_2 = arith.constant 0 : index
    %1 = vector.load %arg2[%c0_1, %c0_2] : memref<1024x256xbf16, #tpu.memory_space<vmem>>, vector<1024x256xbf16>
    %2 = arith.extf %1 : vector<1024x256xbf16> to vector<1024x256xf32>
    %cst = arith.constant dense<0.000000e+00> : vector<8x256xf32>
    %3 = tpu.matmul %0, %2, %cst {dimension_numbers = #tpu.dot_dimension_numbers<[1], [0], [0], [1], [0, 0, 1, 1], [], []>} : vector<8x1024xf32>, vector<1024x256xf32>, vector<8x256xf32> -> vector<8x256xf32>
    %c0_3 = arith.constant 0 : index
    %c0_4 = arith.constant 0 : index
    %4 = vector.load %arg3[%c0_3, %c0_4] : memref<1x256xf32, #tpu.memory_space<vmem>>, vector<1x256xf32>
    %5 = vector.broadcast %4 : vector<1x256xf32> to vector<8x256xf32>
    %6 = arith.addf %3, %5 : vector<8x256xf32>
    %cst_5 = arith.constant 0.000000e+00 : f32
    %7 = vector.broadcast %cst_5 : f32 to vector<8x256xf32>
    %8 = arith.maximumf %6, %7 : vector<8x256xf32>
    %c0_6 = arith.constant 0 : index
    %c0_7 = arith.constant 0 : index
    %9 = vector.load %arg4[%c0_6, %c0_7] : memref<256x64xf32, #tpu.memory_space<vmem>>, vector<256x64xf32>
    %cst_8 = arith.constant dense<0.000000e+00> : vector<8x64xf32>
    %10 = tpu.matmul %8, %9, %cst_8 {dimension_numbers = #tpu.dot_dimension_numbers<[1], [0], [0], [1], [0, 0, 1, 1], [], []>} : vector<8x256xf32>, vector<256x64xf32>, vector<8x64xf32> -> vector<8x64xf32>
    %c0_9 = arith.constant 0 : index
    %c0_10 = arith.constant 0 : index
    %11 = vector.load %arg5[%c0_9, %c0_10] : memref<1x64xf32, #tpu.memory_space<vmem>>, vector<1x64xf32>
    %12 = vector.broadcast %11 : vector<1x64xf32> to vector<8x64xf32>
    %13 = arith.addf %10, %12 : vector<8x64xf32>
    %cst_11 = arith.constant 0.000000e+00 : f32
    %14 = vector.broadcast %cst_11 : f32 to vector<8x64xf32>
    %15 = arith.maximumf %13, %14 : vector<8x64xf32>
    %c0_12 = arith.constant 0 : index
    %c0_13 = arith.constant 0 : index
    %16 = vector.load %arg6[%c0_12, %c0_13] : memref<64x16xf32, #tpu.memory_space<vmem>>, vector<64x16xf32>
    %cst_14 = arith.constant dense<0.000000e+00> : vector<8x16xf32>
    %17 = tpu.matmul %15, %16, %cst_14 {dimension_numbers = #tpu.dot_dimension_numbers<[1], [0], [0], [1], [0, 0, 1, 1], [], []>} : vector<8x64xf32>, vector<64x16xf32>, vector<8x16xf32> -> vector<8x16xf32>
    %c0_15 = arith.constant 0 : index
    %c0_16 = arith.constant 0 : index
    %18 = vector.load %arg7[%c0_15, %c0_16] : memref<1x16xf32, #tpu.memory_space<vmem>>, vector<1x16xf32>
    %19 = vector.broadcast %18 : vector<1x16xf32> to vector<8x16xf32>
    %20 = arith.addf %17, %19 : vector<8x16xf32>
    %cst_17 = arith.constant 0.000000e+00 : f32
    %21 = vector.broadcast %cst_17 : f32 to vector<8x16xf32>
    %22 = arith.maximumf %20, %21 : vector<8x16xf32>
    %c0_18 = arith.constant 0 : index
    %c0_19 = arith.constant 0 : index
    %23 = vector.load %arg8[%c0_18, %c0_19] : memref<16x128xf32, #tpu.memory_space<vmem>>, vector<16x128xf32>
    %cst_20 = arith.constant dense<0.000000e+00> : vector<8x128xf32>
    %24 = tpu.matmul %22, %23, %cst_20 {dimension_numbers = #tpu.dot_dimension_numbers<[1], [0], [0], [1], [0, 0, 1, 1], [], []>} : vector<8x16xf32>, vector<16x128xf32>, vector<8x128xf32> -> vector<8x128xf32>
    %c0_21 = arith.constant 0 : index
    %c0_22 = arith.constant 0 : index
    %25 = vector.load %arg9[%c0_21, %c0_22] : memref<1x128xf32, #tpu.memory_space<vmem>>, vector<1x128xf32>
    %26 = vector.broadcast %25 : vector<1x128xf32> to vector<8x128xf32>
    %27 = arith.addf %24, %26 : vector<8x128xf32>
    %cst_23 = arith.constant dense<0xFF800000> : vector<8xf32>
    %28 = vector.multi_reduction <maximumf>, %27, %cst_23 [1] : vector<8x128xf32> to vector<8xf32>
    %29 = vector.shape_cast %28 : vector<8xf32> to vector<8x1xf32>
    %30 = vector.broadcast %29 : vector<8x1xf32> to vector<8x128xf32>
    %31 = arith.subf %27, %30 : vector<8x128xf32>
    %32 = math.exp %31 : vector<8x128xf32>
    %cst_24 = arith.constant dense<0.000000e+00> : vector<8xf32>
    %33 = vector.multi_reduction <add>, %32, %cst_24 [1] : vector<8x128xf32> to vector<8xf32>
    %34 = vector.shape_cast %33 : vector<8xf32> to vector<8x1xf32>
    %35 = vector.broadcast %34 : vector<8x1xf32> to vector<8x128xf32>
    %36 = arith.divf %32, %35 : vector<8x128xf32>
    %c0_25 = arith.constant 0 : index
    %c0_26 = arith.constant 0 : index
    %37 = vector.load %arg10[%c0_25, %c0_26] : memref<8x128xf32, #tpu.memory_space<vmem>>, vector<8x128xf32>
    tpu.vector_store %arg10[%c0_25, %c0_26], %36 {strides = array<i32>} : memref<8x128xf32, #tpu.memory_space<vmem>>, vector<8x128xf32>,
    return
  }
  func.func @transform_0(%arg0: i32) -> (i32, i32) {
    %c0_i32 = arith.constant 0 : i32
    %c0_i32_0 = arith.constant 0 : i32
    return %arg0, %c0_i32 : i32, i32
  }
  func.func @transform_1(%arg0: i32) -> (i32, i32) {
    %c0_i32 = arith.constant 0 : i32
    %c0_i32_0 = arith.constant 0 : i32
    %c0_i32_1 = arith.constant 0 : i32
    return %c0_i32, %c0_i32_0 : i32, i32
  }
  func.func @transform_2(%arg0: i32) -> (i32, i32) {
    %c0_i32 = arith.constant 0 : i32
    %c0_i32_0 = arith.constant 0 : i32
    %c0_i32_1 = arith.constant 0 : i32
    return %c0_i32, %c0_i32_0 : i32, i32
  }
  func.func @transform_3(%arg0: i32) -> (i32, i32) {
    %c0_i32 = arith.constant 0 : i32
    %c0_i32_0 = arith.constant 0 : i32
    %c0_i32_1 = arith.constant 0 : i32
    return %c0_i32, %c0_i32_0 : i32, i32
  }
  func.func @transform_4(%arg0: i32) -> (i32, i32) {
    %c0_i32 = arith.constant 0 : i32
    %c0_i32_0 = arith.constant 0 : i32
    %c0_i32_1 = arith.constant 0 : i32
    return %c0_i32, %c0_i32_0 : i32, i32
  }
  func.func @transform_5(%arg0: i32) -> (i32, i32) {
    %c0_i32 = arith.constant 0 : i32
    %c0_i32_0 = arith.constant 0 : i32
    %c0_i32_1 = arith.constant 0 : i32
    return %c0_i32, %c0_i32_0 : i32, i32
  }
  func.func @transform_6(%arg0: i32) -> (i32, i32) {
    %c0_i32 = arith.constant 0 : i32
    %c0_i32_0 = arith.constant 0 : i32
    %c0_i32_1 = arith.constant 0 : i32
    return %c0_i32, %c0_i32_0 : i32, i32
  }
  func.func @transform_7(%arg0: i32) -> (i32, i32) {
    %c0_i32 = arith.constant 0 : i32
    %c0_i32_0 = arith.constant 0 : i32
    %c0_i32_1 = arith.constant 0 : i32
    return %c0_i32, %c0_i32_0 : i32, i32
  }
  func.func @transform_8(%arg0: i32) -> (i32, i32) {
    %c0_i32 = arith.constant 0 : i32
    %c0_i32_0 = arith.constant 0 : i32
    %c0_i32_1 = arith.constant 0 : i32
    return %c0_i32, %c0_i32_0 : i32, i32
  }
  func.func @transform_9(%arg0: i32) -> (i32, i32) {
    %c0_i32 = arith.constant 0 : i32
    %c0_i32_0 = arith.constant 0 : i32
    return %arg0, %c0_i32 : i32, i32
  }
}

</mosaic_0001>

<llo_original>
// kernel: mlp_head.1
$region0: #{mlp_head.1}
  #allocation0 [shape = 'u32[]', space=smem, size = 0x4, offset = 0x4, fixed_abs, tag = 'smem constant byte address 0x4 - core index']
  #allocation1 [shape = 'u32[72,128]{1,0:T(1,128)}', space=vmem, size = 0x9000, scoped, tag = 'internal scratch']
  %s0 = inlined_call_operand.vmem [shape: f32[8,1024], index: 0, kind: input, shape index: {}]
  %s1 = inlined_call_operand.vmem [shape: bf16[1024,256], index: 1, kind: input, shape index: {}]
  %s2 = inlined_call_operand.vmem [shape: f32[1,256], index: 2, kind: input, shape index: {}]
  %s3 = inlined_call_operand.vmem [shape: f32[256,64], index: 3, kind: input, shape index: {}]
  %s4 = inlined_call_operand.vmem [shape: f32[1,64], index: 4, kind: input, shape index: {}]
  %s5 = inlined_call_operand.vmem [shape: f32[64,16], index: 5, kind: input, shape index: {}]
  %s6 = inlined_call_operand.vmem [shape: f32[1,16], index: 6, kind: input, shape index: {}]
  %s7 = inlined_call_operand.vmem [shape: f32[16,128], index: 7, kind: input, shape index: {}]
  %s8 = inlined_call_operand.vmem [shape: f32[1,128], index: 8, kind: input, shape index: {}]
  %s9 = inlined_call_operand.vmem [shape: f32[8,128], index: 9, kind: output, shape index: {}]
  %s10 = sld [smem:[#allocation0]]
  $region46: #{mlp_head.1} parent=0
    _
  %s12 = ssub.s32 1, %s10
  %s13 = scalar_select 0, %s12, %s10
  // Predicated region
  $region2: #{mlp_head.1} parent=0 // pred_check
    _
  $region3: #{mlp_head.1} parent=0 // pred_check_branch
    %15 = sbr.rel (0) target = $region5
  $region4: #{mlp_head.1} parent=0 // pred_region
    _
  $region5: #{mlp_head.1} parent=0 // pred_fallthru
    _
  // Predicated region
  $region6: #{mlp_head.1} parent=0 // pred_check
    _
  $region7: #{mlp_head.1} parent=0 // pred_check_branch
    %17 = sbr.rel (0) target = $region9
  $region8: #{mlp_head.1} parent=0 // pred_region
    _
  $region9: #{mlp_head.1} parent=0 // pred_fallthru
    _
  // Predicated region
  $region10: #{mlp_head.1} parent=0 // pred_check
    _
  $region11: #{mlp_head.1} parent=0 // pred_check_branch
    %19 = sbr.rel (0) target = $region13
  $region12: #{mlp_head.1} parent=0 // pred_region
    _
  $region13: #{mlp_head.1} parent=0 // pred_fallthru
    _
  // Predicated region
  $region14: #{mlp_head.1} parent=0 // pred_check
    _
  $region15: #{mlp_head.1} parent=0 // pred_check_branch
    %21 = sbr.rel (0) target = $region17
  $region16: #{mlp_head.1} parent=0 // pred_region
    _
  $region17: #{mlp_head.1} parent=0 // pred_fallthru
    _
  // Predicated region
  $region18: #{mlp_head.1} parent=0 // pred_check
    _
  $region19: #{mlp_head.1} parent=0 // pred_check_branch
    %23 = sbr.rel (0) target = $region21
  $region20: #{mlp_head.1} parent=0 // pred_region
    _
  $region21: #{mlp_head.1} parent=0 // pred_fallthru
    _
  // Predicated region
  $region22: #{mlp_head.1} parent=0 // pred_check
    _
  $region23: #{mlp_head.1} parent=0 // pred_check_branch
    %25 = sbr.rel (0) target = $region25
  $region24: #{mlp_head.1} parent=0 // pred_region
    _
  $region25: #{mlp_head.1} parent=0 // pred_fallthru
    _
  // Predicated region
  $region26: #{mlp_head.1} parent=0 // pred_check
    _
  $region27: #{mlp_head.1} parent=0 // pred_check_branch
    %27 = sbr.rel (0) target = $region29
  $region28: #{mlp_head.1} parent=0 // pred_region
    _
  $region29: #{mlp_head.1} parent=0 // pred_fallthru
    _
  // Predicated region
  $region30: #{mlp_head.1} parent=0 // pred_check
    _
  $region31: #{mlp_head.1} parent=0 // pred_check_branch
    %29 = sbr.rel (0) target = $region33
  $region32: #{mlp_head.1} parent=0 // pred_region
    _
  $region33: #{mlp_head.1} parent=0 // pred_fallthru
    _
  // Predicated region
  $region34: #{mlp_head.1} parent=0 // pred_check
    _
  $region35: #{mlp_head.1} parent=0 // pred_check_branch
    %31 = sbr.rel (0) target = $region37
  $region36: #{mlp_head.1} parent=0 // pred_region
    _
  $region37: #{mlp_head.1} parent=0 // pred_fallthru
    _
  %v32 = vld [vmem:[%s0] sm:$0xff]
  %v33 = vld [vmem:[%s0 + $0x8] sm:$0xff]
  %v34 = vld [vmem:[%s0 + $0x10] sm:$0xff]
  %v35 = vld [vmem:[%s0 + $0x18] sm:$0xff]
  %v36 = vld [vmem:[%s0 + $0x20] sm:$0xff]
  %v37 = vld [vmem:[%s0 + $0x28] sm:$0xff]
  %v38 = vld [vmem:[%s0 + $0x30] sm:$0xff]
  %v39 = vld [vmem:[%s0 + $0x38] sm:$0xff]
  %v40 = vld [vmem:[%s1] sm:$0xff]
  %v41 = vld [vmem:[%s1 + $0x8] sm:$0xff]
  %v42 = vld [vmem:[%s1 + $0x10] sm:$0xff]
  %v43 = vld [vmem:[%s1 + $0x18] sm:$0xff]
  %v44 = vld [vmem:[%s1 + $0x20] sm:$0xff]
  %v45 = vld [vmem:[%s1 + $0x28] sm:$0xff]
  %v46 = vld [vmem:[%s1 + $0x30] sm:$0xff]
  %v47 = vld [vmem:[%s1 + $0x38] sm:$0xff]
  %v48 = vld [vmem:[%s1 + $0x40] sm:$0xff]
  %v49 = vld [vmem:[%s1 + $0x48] sm:$0xff]
  %v50 = vld [vmem:[%s1 + $0x50] sm:$0xff]
  %v51 = vld [vmem:[%s1 + $0x58] sm:$0xff]
  %v52 = vld [vmem:[%s1 + $0x60] sm:$0xff]
  %v53 = vld [vmem:[%s1 + $0x68] sm:$0xff]
  %v54 = vld [vmem:[%s1 + $0x70] sm:$0xff]
  %v55 = vld [vmem:[%s1 + $0x78] sm:$0xff]
  %v56 = vld [vmem:[%s1 + $0x80] sm:$0xff]
  %v57 = vld [vmem:[%s1 + $0x88] sm:$0xff]
  %v58 = vld [vmem:[%s1 + $0x90] sm:$0xff]
  %v59 = vld [vmem:[%s1 + $0x98] sm:$0xff]
  %v60 = vld [vmem:[%s1 + $0xa0] sm:$0xff]
  %v61 = vld [vmem:[%s1 + $0xa8] sm:$0xff]
  %v62 = vld [vmem:[%s1 + $0xb0] sm:$0xff]
  %v63 = vld [vmem:[%s1 + $0xb8] sm:$0xff]
  %v64 = vld [vmem:[%s1 + $0xc0] sm:$0xff]
  %v65 = vld [vmem:[%s1 + $0xc8] sm:$0xff]
  %v66 = vld [vmem:[%s1 + $0xd0] sm:$0xff]
  %v67 = vld [vmem:[%s1 + $0xd8] sm:$0xff]
  %v68 = vld [vmem:[%s1 + $0xe0] sm:$0xff]
  %v69 = vld [vmem:[%s1 + $0xe8] sm:$0xff]
  %v70 = vld [vmem:[%s1 + $0xf0] sm:$0xff]
  %v71 = vld [vmem:[%s1 + $0xf8] sm:$0xff]
  %v72 = vld [vmem:[%s1 + $0x100] sm:$0xff]
  %v73 = vld [vmem:[%s1 + $0x108] sm:$0xff]
  %v74 = vld [vmem:[%s1 + $0x110] sm:$0xff]
  %v75 = vld [vmem:[%s1 + $0x118] sm:$0xff]
  %v76 = vld [vmem:[%s1 + $0x120] sm:$0xff]
  %v77 = vld [vmem:[%s1 + $0x128] sm:$0xff]
  %v78 = vld [vmem:[%s1 + $0x130] sm:$0xff]
  %v79 = vld [vmem:[%s1 + $0x138] sm:$0xff]
  %v80 = vld [vmem:[%s1 + $0x140] sm:$0xff]
  %v81 = vld [vmem:[%s1 + $0x148] sm:$0xff]
  %v82 = vld [vmem:[%s1 + $0x150] sm:$0xff]
  %v83 = vld [vmem:[%s1 + $0x158] sm:$0xff]
  %v84 = vld [vmem:[%s1 + $0x160] sm:$0xff]
  %v85 = vld [vmem:[%s1 + $0x168] sm:$0xff]
  %v86 = vld [vmem:[%s1 + $0x170] sm:$0xff]
  %v87 = vld [vmem:[%s1 + $0x178] sm:$0xff]
  %v88 = vld [vmem:[%s1 + $0x180] sm:$0xff]
  %v89 = vld [vmem:[%s1 + $0x188] sm:$0xff]
  %v90 = vld [vmem:[%s1 + $0x190] sm:$0xff]
  %v91 = vld [vmem:[%s1 + $0x198] sm:$0xff]
  %v92 = vld [vmem:[%s1 + $0x1a0] sm:$0xff]
  %v93 = vld [vmem:[%s1 + $0x1a8] sm:$0xff]
  %v94 = vld [vmem:[%s1 + $0x1b0] sm:$0xff]
  %v95 = vld [vmem:[%s1 + $0x1b8] sm:$0xff]
  %v96 = vld [vmem:[%s1 + $0x1c0] sm:$0xff]
  %v97 = vld [vmem:[%s1 + $0x1c8] sm:$0xff]
  %v98 = vld [vmem:[%s1 + $0x1d0] sm:$0xff]
  %v99 = vld [vmem:[%s1 + $0x1d8] sm:$0xff]
  %v100 = vld [vmem:[%s1 + $0x1e0] sm:$0xff]
  %v101 = vld [vmem:[%s1 + $0x1e8] sm:$0xff]
  %v102 = vld [vmem:[%s1 + $0x1f0] sm:$0xff]
  %v103 = vld [vmem:[%s1 + $0x1f8] sm:$0xff]
  %v104 = vld [vmem:[%s1 + $0x200] sm:$0xff]
  %v105 = vld [vmem:[%s1 + $0x208] sm:$0xff]
  %v106 = vld [vmem:[%s1 + $0x210] sm:$0xff]
  %v107 = vld [vmem:[%s1 + $0x218] sm:$0xff]
  %v108 = vld [vmem:[%s1 + $0x220] sm:$0xff]
  %v109 = vld [vmem:[%s1 + $0x228] sm:$0xff]
  %v110 = vld [vmem:[%s1 + $0x230] sm:$0xff]
  %v111 = vld [vmem:[%s1 + $0x238] sm:$0xff]
  %v112 = vld [vmem:[%s1 + $0x240] sm:$0xff]
  %v113 = vld [vmem:[%s1 + $0x248] sm:$0xff]
  %v114 = vld [vmem:[%s1 + $0x250] sm:$0xff]
  %v115 = vld [vmem:[%s1 + $0x258] sm:$0xff]
  %v116 = vld [vmem:[%s1 + $0x260] sm:$0xff]
  %v117 = vld [vmem:[%s1 + $0x268] sm:$0xff]
  %v118 = vld [vmem:[%s1 + $0x270] sm:$0xff]
  %v119 = vld [vmem:[%s1 + $0x278] sm:$0xff]
  %v120 = vld [vmem:[%s1 + $0x280] sm:$0xff]
  %v121 = vld [vmem:[%s1 + $0x288] sm:$0xff]
  %v122 = vld [vmem:[%s1 + $0x290] sm:$0xff]
  %v123 = vld [vmem:[%s1 + $0x298] sm:$0xff]
  %v124 = vld [vmem:[%s1 + $0x2a0] sm:$0xff]
  %v125 = vld [vmem:[%s1 + $0x2a8] sm:$0xff]
  %v126 = vld [vmem:[%s1 + $0x2b0] sm:$0xff]
  %v127 = vld [vmem:[%s1 + $0x2b8] sm:$0xff]
  %v128 = vld [vmem:[%s1 + $0x2c0] sm:$0xff]
  %v129 = vld [vmem:[%s1 + $0x2c8] sm:$0xff]
  %v130 = vld [vmem:[%s1 + $0x2d0] sm:$0xff]
  %v131 = vld [vmem:[%s1 + $0x2d8] sm:$0xff]
  %v132 = vld [vmem:[%s1 + $0x2e0] sm:$0xff]
  %v133 = vld [vmem:[%s1 + $0x2e8] sm:$0xff]
  %v134 = vld [vmem:[%s1 + $0x2f0] sm:$0xff]
  %v135 = vld [vmem:[%s1 + $0x2f8] sm:$0xff]
  %v136 = vld [vmem:[%s1 + $0x300] sm:$0xff]
  %v137 = vld [vmem:[%s1 + $0x308] sm:$0xff]
  %v138 = vld [vmem:[%s1 + $0x310] sm:$0xff]
  %v139 = vld [vmem:[%s1 + $0x318] sm:$0xff]
  %v140 = vld [vmem:[%s1 + $0x320] sm:$0xff]
  %v141 = vld [vmem:[%s1 + $0x328] sm:$0xff]
  %v142 = vld [vmem:[%s1 + $0x330] sm:$0xff]
  %v143 = vld [vmem:[%s1 + $0x338] sm:$0xff]
  %v144 = vld [vmem:[%s1 + $0x340] sm:$0xff]
  %v145 = vld [vmem:[%s1 + $0x348] sm:$0xff]
  %v146 = vld [vmem:[%s1 + $0x350] sm:$0xff]
  %v147 = vld [vmem:[%s1 + $0x358] sm:$0xff]
  %v148 = vld [vmem:[%s1 + $0x360] sm:$0xff]
  %v149 = vld [vmem:[%s1 + $0x368] sm:$0xff]
  %v150 = vld [vmem:[%s1 + $0x370] sm:$0xff]
  %v151 = vld [vmem:[%s1 + $0x378] sm:$0xff]
  %v152 = vld [vmem:[%s1 + $0x380] sm:$0xff]
  %v153 = vld [vmem:[%s1 + $0x388] sm:$0xff]
  %v154 = vld [vmem:[%s1 + $0x390] sm:$0xff]
  %v155 = vld [vmem:[%s1 + $0x398] sm:$0xff]
  %v156 = vld [vmem:[%s1 + $0x3a0] sm:$0xff]
  %v157 = vld [vmem:[%s1 + $0x3a8] sm:$0xff]
  %v158 = vld [vmem:[%s1 + $0x3b0] sm:$0xff]
  %v159 = vld [vmem:[%s1 + $0x3b8] sm:$0xff]
  %v160 = vld [vmem:[%s1 + $0x3c0] sm:$0xff]
  %v161 = vld [vmem:[%s1 + $0x3c8] sm:$0xff]
  %v162 = vld [vmem:[%s1 + $0x3d0] sm:$0xff]
  %v163 = vld [vmem:[%s1 + $0x3d8] sm:$0xff]
  %v164 = vld [vmem:[%s1 + $0x3e0] sm:$0xff]
  %v165 = vld [vmem:[%s1 + $0x3e8] sm:$0xff]
  %v166 = vld [vmem:[%s1 + $0x3f0] sm:$0xff]
  %v167 = vld [vmem:[%s1 + $0x3f8] sm:$0xff]
  %v168 = vunpack.c.l.bf16 %v40
  %v169 = vunpack.c.h.bf16 %v40
  %v170 = vunpack.c.l.bf16 %v41
  %v171 = vunpack.c.h.bf16 %v41
  %v172 = vunpack.c.l.bf16 %v42
  %v173 = vunpack.c.h.bf16 %v42
  %v174 = vunpack.c.l.bf16 %v43
  %v175 = vunpack.c.h.bf16 %v43
  %v176 = vunpack.c.l.bf16 %v44
  %v177 = vunpack.c.h.bf16 %v44
  %v178 = vunpack.c.l.bf16 %v45
  %v179 = vunpack.c.h.bf16 %v45
  %v180 = vunpack.c.l.bf16 %v46
  %v181 = vunpack.c.h.bf16 %v46
  %v182 = vunpack.c.l.bf16 %v47
  %v183 = vunpack.c.h.bf16 %v47
  %v184 = vunpack.c.l.bf16 %v48
  %v185 = vunpack.c.h.bf16 %v48
  %v186 = vunpack.c.l.bf16 %v49
  %v187 = vunpack.c.h.bf16 %v49
  %v188 = vunpack.c.l.bf16 %v50
  %v189 = vunpack.c.h.bf16 %v50
  %v190 = vunpack.c.l.bf16 %v51
  %v191 = vunpack.c.h.bf16 %v51
  %v192 = vunpack.c.l.bf16 %v52
  %v193 = vunpack.c.h.bf16 %v52
  %v194 = vunpack.c.l.bf16 %v53
  %v195 = vunpack.c.h.bf16 %v53
  %v196 = vunpack.c.l.bf16 %v54
  %v197 = vunpack.c.h.bf16 %v54
  %v198 = vunpack.c.l.bf16 %v55
  %v199 = vunpack.c.h.bf16 %v55
  %v200 = vunpack.c.l.bf16 %v56
  %v201 = vunpack.c.h.bf16 %v56
  %v202 = vunpack.c.l.bf16 %v57
  %v203 = vunpack.c.h.bf16 %v57
  %v204 = vunpack.c.l.bf16 %v58
  %v205 = vunpack.c.h.bf16 %v58
  %v206 = vunpack.c.l.bf16 %v59
  %v207 = vunpack.c.h.bf16 %v59
  %v208 = vunpack.c.l.bf16 %v60
  %v209 = vunpack.c.h.bf16 %v60
  %v210 = vunpack.c.l.bf16 %v61
  %v211 = vunpack.c.h.bf16 %v61
  %v212 = vunpack.c.l.bf16 %v62
  %v213 = vunpack.c.h.bf16 %v62
  %v214 = vunpack.c.l.bf16 %v63
  %v215 = vunpack.c.h.bf16 %v63
  %v216 = vunpack.c.l.bf16 %v64
  %v217 = vunpack.c.h.bf16 %v64
  %v218 = vunpack.c.l.bf16 %v65
  %v219 = vunpack.c.h.bf16 %v65
  %v220 = vunpack.c.l.bf16 %v66
  %v221 = vunpack.c.h.bf16 %v66
  %v222 = vunpack.c.l.bf16 %v67
  %v223 = vunpack.c.h.bf16 %v67
  %v224 = vunpack.c.l.bf16 %v68
  %v225 = vunpack.c.h.bf16 %v68
  %v226 = vunpack.c.l.bf16 %v69
  %v227 = vunpack.c.h.bf16 %v69
  %v228 = vunpack.c.l.bf16 %v70
  %v229 = vunpack.c.h.bf16 %v70
  %v230 = vunpack.c.l.bf16 %v71
  %v231 = vunpack.c.h.bf16 %v71
  %v232 = vunpack.c.l.bf16 %v72
  %v233 = vunpack.c.h.bf16 %v72
  %v234 = vunpack.c.l.bf16 %v73
  %v235 = vunpack.c.h.bf16 %v73
  %v236 = vunpack.c.l.bf16 %v74
  %v237 = vunpack.c.h.bf16 %v74
  %v238 = vunpack.c.l.bf16 %v75
  %v239 = vunpack.c.h.bf16 %v75
  %v240 = vunpack.c.l.bf16 %v76
  %v241 = vunpack.c.h.bf16 %v76
  %v242 = vunpack.c.l.bf16 %v77
  %v243 = vunpack.c.h.bf16 %v77
  %v244 = vunpack.c.l.bf16 %v78
  %v245 = vunpack.c.h.bf16 %v78
  %v246 = vunpack.c.l.bf16 %v79
  %v247 = vunpack.c.h.bf16 %v79
  %v248 = vunpack.c.l.bf16 %v80
  %v249 = vunpack.c.h.bf16 %v80
  %v250 = vunpack.c.l.bf16 %v81
  %v251 = vunpack.c.h.bf16 %v81
  %v252 = vunpack.c.l.bf16 %v82
  %v253 = vunpack.c.h.bf16 %v82
  %v254 = vunpack.c.l.bf16 %v83
  %v255 = vunpack.c.h.bf16 %v83
  %v256 = vunpack.c.l.bf16 %v84
  %v257 = vunpack.c.h.bf16 %v84
  %v258 = vunpack.c.l.bf16 %v85
  %v259 = vunpack.c.h.bf16 %v85
  %v260 = vunpack.c.l.bf16 %v86
  %v261 = vunpack.c.h.bf16 %v86
  %v262 = vunpack.c.l.bf16 %v87
  %v263 = vunpack.c.h.bf16 %v87
  %v264 = vunpack.c.l.bf16 %v88
  %v265 = vunpack.c.h.bf16 %v88
  %v266 = vunpack.c.l.bf16 %v89
  %v267 = vunpack.c.h.bf16 %v89
  %v268 = vunpack.c.l.bf16 %v90
  %v269 = vunpack.c.h.bf16 %v90
  %v270 = vunpack.c.l.bf16 %v91
  %v271 = vunpack.c.h.bf16 %v91
  %v272 = vunpack.c.l.bf16 %v92
  %v273 = vunpack.c.h.bf16 %v92
  %v274 = vunpack.c.l.bf16 %v93
  %v275 = vunpack.c.h.bf16 %v93
  %v276 = vunpack.c.l.bf16 %v94
  %v277 = vunpack.c.h.bf16 %v94
  %v278 = vunpack.c.l.bf16 %v95
  %v279 = vunpack.c.h.bf16 %v95
  %v280 = vunpack.c.l.bf16 %v96
  %v281 = vunpack.c.h.bf16 %v96
  %v282 = vunpack.c.l.bf16 %v97
  %v283 = vunpack.c.h.bf16 %v97
  %v284 = vunpack.c.l.bf16 %v98
  %v285 = vunpack.c.h.bf16 %v98
  %v286 = vunpack.c.l.bf16 %v99
  %v287 = vunpack.c.h.bf16 %v99
  %v288 = vunpack.c.l.bf16 %v100
  %v289 = vunpack.c.h.bf16 %v100
  %v290 = vunpack.c.l.bf16 %v101
  %v291 = vunpack.c.h.bf16 %v101
  %v292 = vunpack.c.l.bf16 %v102
  %v293 = vunpack.c.h.bf16 %v102
  %v294 = vunpack.c.l.bf16 %v103
  %v295 = vunpack.c.h.bf16 %v103
  %v296 = vunpack.c.l.bf16 %v104
  %v297 = vunpack.c.h.bf16 %v104
  %v298 = vunpack.c.l.bf16 %v105
  %v299 = vunpack.c.h.bf16 %v105
  %v300 = vunpack.c.l.bf16 %v106
  %v301 = vunpack.c.h.bf16 %v106
  %v302 = vunpack.c.l.bf16 %v107
  %v303 = vunpack.c.h.bf16 %v107
  %v304 = vunpack.c.l.bf16 %v108
  %v305 = vunpack.c.h.bf16 %v108
  %v306 = vunpack.c.l.bf16 %v109
  %v307 = vunpack.c.h.bf16 %v109
  %v308 = vunpack.c.l.bf16 %v110
  %v309 = vunpack.c.h.bf16 %v110
  %v310 = vunpack.c.l.bf16 %v111
  %v311 = vunpack.c.h.bf16 %v111
  %v312 = vunpack.c.l.bf16 %v112
  %v313 = vunpack.c.h.bf16 %v112
  %v314 = vunpack.c.l.bf16 %v113
  %v315 = vunpack.c.h.bf16 %v113
  %v316 = vunpack.c.l.bf16 %v114
  %v317 = vunpack.c.h.bf16 %v114
  %v318 = vunpack.c.l.bf16 %v115
  %v319 = vunpack.c.h.bf16 %v115
  %v320 = vunpack.c.l.bf16 %v116
  %v321 = vunpack.c.h.bf16 %v116
  %v322 = vunpack.c.l.bf16 %v117
  %v323 = vunpack.c.h.bf16 %v117
  %v324 = vunpack.c.l.bf16 %v118
  %v325 = vunpack.c.h.bf16 %v118
  %v326 = vunpack.c.l.bf16 %v119
  %v327 = vunpack.c.h.bf16 %v119
  %v328 = vunpack.c.l.bf16 %v120
  %v329 = vunpack.c.h.bf16 %v120
  %v330 = vunpack.c.l.bf16 %v121
  %v331 = vunpack.c.h.bf16 %v121
  %v332 = vunpack.c.l.bf16 %v122
  %v333 = vunpack.c.h.bf16 %v122
  %v334 = vunpack.c.l.bf16 %v123
  %v335 = vunpack.c.h.bf16 %v123
  %v336 = vunpack.c.l.bf16 %v124
  %v337 = vunpack.c.h.bf16 %v124
  %v338 = vunpack.c.l.bf16 %v125
  %v339 = vunpack.c.h.bf16 %v125
  %v340 = vunpack.c.l.bf16 %v126
  %v341 = vunpack.c.h.bf16 %v126
  %v342 = vunpack.c.l.bf16 %v127
  %v343 = vunpack.c.h.bf16 %v127
  %v344 = vunpack.c.l.bf16 %v128
  %v345 = vunpack.c.h.bf16 %v128
  %v346 = vunpack.c.l.bf16 %v129
  %v347 = vunpack.c.h.bf16 %v129
  %v348 = vunpack.c.l.bf16 %v130
  %v349 = vunpack.c.h.bf16 %v130
  %v350 = vunpack.c.l.bf16 %v131
  %v351 = vunpack.c.h.bf16 %v131
  %v352 = vunpack.c.l.bf16 %v132
  %v353 = vunpack.c.h.bf16 %v132
  %v354 = vunpack.c.l.bf16 %v133
  %v355 = vunpack.c.h.bf16 %v133
  %v356 = vunpack.c.l.bf16 %v134
  %v357 = vunpack.c.h.bf16 %v134
  %v358 = vunpack.c.l.bf16 %v135
  %v359 = vunpack.c.h.bf16 %v135
  %v360 = vunpack.c.l.bf16 %v136
  %v361 = vunpack.c.h.bf16 %v136
  %v362 = vunpack.c.l.bf16 %v137
  %v363 = vunpack.c.h.bf16 %v137
  %v364 = vunpack.c.l.bf16 %v138
  %v365 = vunpack.c.h.bf16 %v138
  %v366 = vunpack.c.l.bf16 %v139
  %v367 = vunpack.c.h.bf16 %v139
  %v368 = vunpack.c.l.bf16 %v140
  %v369 = vunpack.c.h.bf16 %v140
  %v370 = vunpack.c.l.bf16 %v141
  %v371 = vunpack.c.h.bf16 %v141
  %v372 = vunpack.c.l.bf16 %v142
  %v373 = vunpack.c.h.bf16 %v142
  %v374 = vunpack.c.l.bf16 %v143
  %v375 = vunpack.c.h.bf16 %v143
  %v376 = vunpack.c.l.bf16 %v144
  %v377 = vunpack.c.h.bf16 %v144
  %v378 = vunpack.c.l.bf16 %v145
  %v379 = vunpack.c.h.bf16 %v145
  %v380 = vunpack.c.l.bf16 %v146
  %v381 = vunpack.c.h.bf16 %v146
  %v382 = vunpack.c.l.bf16 %v147
  %v383 = vunpack.c.h.bf16 %v147
  %v384 = vunpack.c.l.bf16 %v148
  %v385 = vunpack.c.h.bf16 %v148
  %v386 = vunpack.c.l.bf16 %v149
  %v387 = vunpack.c.h.bf16 %v149
  %v388 = vunpack.c.l.bf16 %v150
  %v389 = vunpack.c.h.bf16 %v150
  %v390 = vunpack.c.l.bf16 %v151
  %v391 = vunpack.c.h.bf16 %v151
  %v392 = vunpack.c.l.bf16 %v152
  %v393 = vunpack.c.h.bf16 %v152
  %v394 = vunpack.c.l.bf16 %v153
  %v395 = vunpack.c.h.bf16 %v153
  %v396 = vunpack.c.l.bf16 %v154
  %v397 = vunpack.c.h.bf16 %v154
  %v398 = vunpack.c.l.bf16 %v155
  %v399 = vunpack.c.h.bf16 %v155
  %v400 = vunpack.c.l.bf16 %v156
  %v401 = vunpack.c.h.bf16 %v156
  %v402 = vunpack.c.l.bf16 %v157
  %v403 = vunpack.c.h.bf16 %v157
  %v404 = vunpack.c.l.bf16 %v158
  %v405 = vunpack.c.h.bf16 %v158
  %v406 = vunpack.c.l.bf16 %v159
  %v407 = vunpack.c.h.bf16 %v159
  %v408 = vunpack.c.l.bf16 %v160
  %v409 = vunpack.c.h.bf16 %v160
  %v410 = vunpack.c.l.bf16 %v161
  %v411 = vunpack.c.h.bf16 %v161
  %v412 = vunpack.c.l.bf16 %v162
  %v413 = vunpack.c.h.bf16 %v162
  %v414 = vunpack.c.l.bf16 %v163
  %v415 = vunpack.c.h.bf16 %v163
  %v416 = vunpack.c.l.bf16 %v164
  %v417 = vunpack.c.h.bf16 %v164
  %v418 = vunpack.c.l.bf16 %v165
  %v419 = vunpack.c.h.bf16 %v165
  %v420 = vunpack.c.l.bf16 %v166
  %v421 = vunpack.c.h.bf16 %v166
  %v422 = vunpack.c.l.bf16 %v167
  %v423 = vunpack.c.h.bf16 %v167
  %v424 = vld [vmem:[%s2] sm:$0x3]
  %v426 = vperm.slane %v424, 0
  %v427 = vperm.slane %v424, 1
  %430 = vmatpush.msra.mxu0 %v198
  %431 = vmatpush.msra.mxu0 %v196
  %432 = vmatpush.msra.mxu0 %v194
  %433 = vmatpush.msra.mxu0 %v192
  %434 = vmatpush.msra.mxu0 %v190
  %435 = vmatpush.msra.mxu0 %v188
  %436 = vmatpush.msra.mxu0 %v186
  %437 = vmatpush.msra.mxu0 %v184
  %438 = vmatpush.msra.mxu0 %v182
  %439 = vmatpush.msra.mxu0 %v180
  %440 = vmatpush.msra.mxu0 %v178
  %441 = vmatpush.msra.mxu0 %v176
  %442 = vmatpush.msra.mxu0 %v174
  %443 = vmatpush.msra.mxu0 %v172
  %444 = vmatpush.msra.mxu0 %v170
  %445 = vmatpush.msra.mxu0 %v168
  %446 = vmatmul.f32.gmra.mxu0 %v32
  %v447 = vpop.f32.mrf.mxu0
  %v448 = vadd.f32 %v426, %v447
  %449 = vdwg.mxu0
  %450 = vmatpush.msra.mxu0 %v230
  %451 = vmatpush.msra.mxu0 %v228
  %452 = vmatpush.msra.mxu0 %v226
  %453 = vmatpush.msra.mxu0 %v224
  %454 = vmatpush.msra.mxu0 %v222
  %455 = vmatpush.msra.mxu0 %v220
  %456 = vmatpush.msra.mxu0 %v218
  %457 = vmatpush.msra.mxu0 %v216
  %458 = vmatpush.msra.mxu0 %v214
  %459 = vmatpush.msra.mxu0 %v212
  %460 = vmatpush.msra.mxu0 %v210
  %461 = vmatpush.msra.mxu0 %v208
  %462 = vmatpush.msra.mxu0 %v206
  %463 = vmatpush.msra.mxu0 %v204
  %464 = vmatpush.msra.mxu0 %v202
  %465 = vmatpush.msra.mxu0 %v200
  %466 = vmatmul.f32.gmra.mxu0 %v33
  %v467 = vpop.f32.mrf.mxu0
  %v468 = vadd.f32 %v448, %v467
  %469 = vdwg.mxu0
  %470 = vmatpush.msra.mxu0 %v262
  %471 = vmatpush.msra.mxu0 %v260
  %472 = vmatpush.msra.mxu0 %v258
  %473 = vmatpush.msra.mxu0 %v256
  %474 = vmatpush.msra.mxu0 %v254
  %475 = vmatpush.msra.mxu0 %v252
  %476 = vmatpush.msra.mxu0 %v250
  %477 = vmatpush.msra.mxu0 %v248
  %478 = vmatpush.msra.mxu0 %v246
  %479 = vmatpush.msra.mxu0 %v244
  %480 = vmatpush.msra.mxu0 %v242
  %481 = vmatpush.msra.mxu0 %v240
  %482 = vmatpush.msra.mxu0 %v238
  %483 = vmatpush.msra.mxu0 %v236
  %484 = vmatpush.msra.mxu0 %v234
  %485 = vmatpush.msra.mxu0 %v232
  %486 = vmatmul.f32.gmra.mxu0 %v34
  %v487 = vpop.f32.mrf.mxu0
  %v488 = vadd.f32 %v468, %v487
  %489 = vdwg.mxu0
  %490 = vmatpush.msra.mxu0 %v294
  %491 = vmatpush.msra.mxu0 %v292
  %492 = vmatpush.msra.mxu0 %v290
  %493 = vmatpush.msra.mxu0 %v288
  %494 = vmatpush.msra.mxu0 %v286
  %495 = vmatpush.msra.mxu0 %v284
  %496 = vmatpush.msra.mxu0 %v282
  %497 = vmatpush.msra.mxu0 %v280
  %498 = vmatpush.msra.mxu0 %v278
  %499 = vmatpush.msra.mxu0 %v276
  %500 = vmatpush.msra.mxu0 %v274
  %501 = vmatpush.msra.mxu0 %v272
  %502 = vmatpush.msra.mxu0 %v270
  %503 = vmatpush.msra.mxu0 %v268
  %504 = vmatpush.msra.mxu0 %v266
  %505 = vmatpush.msra.mxu0 %v264
  %506 = vmatmul.f32.gmra.mxu0 %v35
  %v507 = vpop.f32.mrf.mxu0
  %v508 = vadd.f32 %v488, %v507
  %509 = vdwg.mxu0
  %510 = vmatpush.msra.mxu0 %v326
  %511 = vmatpush.msra.mxu0 %v324
  %512 = vmatpush.msra.mxu0 %v322
  %513 = vmatpush.msra.mxu0 %v320
  %514 = vmatpush.msra.mxu0 %v318
  %515 = vmatpush.msra.mxu0 %v316
  %516 = vmatpush.msra.mxu0 %v314
  %517 = vmatpush.msra.mxu0 %v312
  %518 = vmatpush.msra.mxu0 %v310
  %519 = vmatpush.msra.mxu0 %v308
  %520 = vmatpush.msra.mxu0 %v306
  %521 = vmatpush.msra.mxu0 %v304
  %522 = vmatpush.msra.mxu0 %v302
  %523 = vmatpush.msra.mxu0 %v300
  %524 = vmatpush.msra.mxu0 %v298
  %525 = vmatpush.msra.mxu0 %v296
  %526 = vmatmul.f32.gmra.mxu0 %v36
  %v527 = vpop.f32.mrf.mxu0
  %v528 = vadd.f32 %v508, %v527
  %529 = vdwg.mxu0
  %530 = vmatpush.msra.mxu0 %v358
  %531 = vmatpush.msra.mxu0 %v356
  %532 = vmatpush.msra.mxu0 %v354
  %533 = vmatpush.msra.mxu0 %v352
  %534 = vmatpush.msra.mxu0 %v350
  %535 = vmatpush.msra.mxu0 %v348
  %536 = vmatpush.msra.mxu0 %v346
  %537 = vmatpush.msra.mxu0 %v344
  %538 = vmatpush.msra.mxu0 %v342
  %539 = vmatpush.msra.mxu0 %v340
  %540 = vmatpush.msra.mxu0 %v338
  %541 = vmatpush.msra.mxu0 %v336
  %542 = vmatpush.msra.mxu0 %v334
  %543 = vmatpush.msra.mxu0 %v332
  %544 = vmatpush.msra.mxu0 %v330
  %545 = vmatpush.msra.mxu0 %v328
  %546 = vmatmul.f32.gmra.mxu0 %v37
  %v547 = vpop.f32.mrf.mxu0
  %v548 = vadd.f32 %v528, %v547
  %549 = vdwg.mxu0
  %550 = vmatpush.msra.mxu0 %v390
  %551 = vmatpush.msra.mxu0 %v388
  %552 = vmatpush.msra.mxu0 %v386
  %553 = vmatpush.msra.mxu0 %v384
  %554 = vmatpush.msra.mxu0 %v382
  %555 = vmatpush.msra.mxu0 %v380
  %556 = vmatpush.msra.mxu0 %v378
  %557 = vmatpush.msra.mxu0 %v376
  %558 = vmatpush.msra.mxu0 %v374
  %559 = vmatpush.msra.mxu0 %v372
  %560 = vmatpush.msra.mxu0 %v370
  %561 = vmatpush.msra.mxu0 %v368
  %562 = vmatpush.msra.mxu0 %v366
  %563 = vmatpush.msra.mxu0 %v364
  %564 = vmatpush.msra.mxu0 %v362
  %565 = vmatpush.msra.mxu0 %v360
  %566 = vmatmul.f32.gmra.mxu0 %v38
  %v567 = vpop.f32.mrf.mxu0
  %v568 = vadd.f32 %v548, %v567
  %569 = vdwg.mxu0
  %570 = vmatpush.msra.mxu0 %v422
  %571 = vmatpush.msra.mxu0 %v420
  %572 = vmatpush.msra.mxu0 %v418
  %573 = vmatpush.msra.mxu0 %v416
  %574 = vmatpush.msra.mxu0 %v414
  %575 = vmatpush.msra.mxu0 %v412
  %576 = vmatpush.msra.mxu0 %v410
  %577 = vmatpush.msra.mxu0 %v408
  %578 = vmatpush.msra.mxu0 %v406
  %579 = vmatpush.msra.mxu0 %v404
  %580 = vmatpush.msra.mxu0 %v402
  %581 = vmatpush.msra.mxu0 %v400
  %582 = vmatpush.msra.mxu0 %v398
  %583 = vmatpush.msra.mxu0 %v396
  %584 = vmatpush.msra.mxu0 %v394
  %585 = vmatpush.msra.mxu0 %v392
  %586 = vmatmul.f32.gmra.mxu0 %v39
  %v587 = vpop.f32.mrf.mxu0
  %v588 = vadd.f32 %v568, %v587
  %589 = vdwg.mxu0
  %590 = vmatpush.msra.mxu0 %v199
  %591 = vmatpush.msra.mxu0 %v197
  %592 = vmatpush.msra.mxu0 %v195
  %593 = vmatpush.msra.mxu0 %v193
  %594 = vmatpush.msra.mxu0 %v191
  %595 = vmatpush.msra.mxu0 %v189
  %596 = vmatpush.msra.mxu0 %v187
  %597 = vmatpush.msra.mxu0 %v185
  %598 = vmatpush.msra.mxu0 %v183
  %599 = vmatpush.msra.mxu0 %v181
  %600 = vmatpush.msra.mxu0 %v179
  %601 = vmatpush.msra.mxu0 %v177
  %602 = vmatpush.msra.mxu0 %v175
  %603 = vmatpush.msra.mxu0 %v173
  %604 = vmatpush.msra.mxu0 %v171
  %605 = vmatpush.msra.mxu0 %v169
  %606 = vmatmul.f32.gmra.mxu0 %v32
  %v607 = vpop.f32.mrf.mxu0
  %v608 = vadd.f32 %v427, %v607
  %609 = vdwg.mxu0
  %610 = vmatpush.msra.mxu0 %v231
  %611 = vmatpush.msra.mxu0 %v229
  %612 = vmatpush.msra.mxu0 %v227
  %613 = vmatpush.msra.mxu0 %v225
  %614 = vmatpush.msra.mxu0 %v223
  %615 = vmatpush.msra.mxu0 %v221
  %616 = vmatpush.msra.mxu0 %v219
  %617 = vmatpush.msra.mxu0 %v217
  %618 = vmatpush.msra.mxu0 %v215
  %619 = vmatpush.msra.mxu0 %v213
  %620 = vmatpush.msra.mxu0 %v211
  %621 = vmatpush.msra.mxu0 %v209
  %622 = vmatpush.msra.mxu0 %v207
  %623 = vmatpush.msra.mxu0 %v205
  %624 = vmatpush.msra.mxu0 %v203
  %625 = vmatpush.msra.mxu0 %v201
  %626 = vmatmul.f32.gmra.mxu0 %v33
  %v627 = vpop.f32.mrf.mxu0
  %v628 = vadd.f32 %v608, %v627
  %629 = vdwg.mxu0
  %630 = vmatpush.msra.mxu0 %v263
  %631 = vmatpush.msra.mxu0 %v261
  %632 = vmatpush.msra.mxu0 %v259
  %633 = vmatpush.msra.mxu0 %v257
  %634 = vmatpush.msra.mxu0 %v255
  %635 = vmatpush.msra.mxu0 %v253
  %636 = vmatpush.msra.mxu0 %v251
  %637 = vmatpush.msra.mxu0 %v249
  %638 = vmatpush.msra.mxu0 %v247
  %639 = vmatpush.msra.mxu0 %v245
  %640 = vmatpush.msra.mxu0 %v243
  %641 = vmatpush.msra.mxu0 %v241
  %642 = vmatpush.msra.mxu0 %v239
  %643 = vmatpush.msra.mxu0 %v237
  %644 = vmatpush.msra.mxu0 %v235
  %645 = vmatpush.msra.mxu0 %v233
  %646 = vmatmul.f32.gmra.mxu0 %v34
  %v647 = vpop.f32.mrf.mxu0
  %v648 = vadd.f32 %v628, %v647
  %649 = vdwg.mxu0
  %650 = vmatpush.msra.mxu0 %v295
  %651 = vmatpush.msra.mxu0 %v293
  %652 = vmatpush.msra.mxu0 %v291
  %653 = vmatpush.msra.mxu0 %v289
  %654 = vmatpush.msra.mxu0 %v287
  %655 = vmatpush.msra.mxu0 %v285
  %656 = vmatpush.msra.mxu0 %v283
  %657 = vmatpush.msra.mxu0 %v281
  %658 = vmatpush.msra.mxu0 %v279
  %659 = vmatpush.msra.mxu0 %v277
  %660 = vmatpush.msra.mxu0 %v275
  %661 = vmatpush.msra.mxu0 %v273
  %662 = vmatpush.msra.mxu0 %v271
  %663 = vmatpush.msra.mxu0 %v269
  %664 = vmatpush.msra.mxu0 %v267
  %665 = vmatpush.msra.mxu0 %v265
  %666 = vmatmul.f32.gmra.mxu0 %v35
  %v667 = vpop.f32.mrf.mxu0
  %v668 = vadd.f32 %v648, %v667
  %669 = vdwg.mxu0
  %670 = vmatpush.msra.mxu0 %v327
  %671 = vmatpush.msra.mxu0 %v325
  %672 = vmatpush.msra.mxu0 %v323
  %673 = vmatpush.msra.mxu0 %v321
  %674 = vmatpush.msra.mxu0 %v319
  %675 = vmatpush.msra.mxu0 %v317
  %676 = vmatpush.msra.mxu0 %v315
  %677 = vmatpush.msra.mxu0 %v313
  %678 = vmatpush.msra.mxu0 %v311
  %679 = vmatpush.msra.mxu0 %v309
  %680 = vmatpush.msra.mxu0 %v307
  %681 = vmatpush.msra.mxu0 %v305
  %682 = vmatpush.msra.mxu0 %v303
  %683 = vmatpush.msra.mxu0 %v301
  %684 = vmatpush.msra.mxu0 %v299
  %685 = vmatpush.msra.mxu0 %v297
  %686 = vmatmul.f32.gmra.mxu0 %v36
  %v687 = vpop.f32.mrf.mxu0
  %v688 = vadd.f32 %v668, %v687
  %689 = vdwg.mxu0
  %690 = vmatpush.msra.mxu0 %v359
  %691 = vmatpush.msra.mxu0 %v357
  %692 = vmatpush.msra.mxu0 %v355
  %693 = vmatpush.msra.mxu0 %v353
  %694 = vmatpush.msra.mxu0 %v351
  %695 = vmatpush.msra.mxu0 %v349
  %696 = vmatpush.msra.mxu0 %v347
  %697 = vmatpush.msra.mxu0 %v345
  %698 = vmatpush.msra.mxu0 %v343
  %699 = vmatpush.msra.mxu0 %v341
  %700 = vmatpush.msra.mxu0 %v339
  %701 = vmatpush.msra.mxu0 %v337
  %702 = vmatpush.msra.mxu0 %v335
  %703 = vmatpush.msra.mxu0 %v333
  %704 = vmatpush.msra.mxu0 %v331
  %705 = vmatpush.msra.mxu0 %v329
  %706 = vmatmul.f32.gmra.mxu0 %v37
  %v707 = vpop.f32.mrf.mxu0
  %v708 = vadd.f32 %v688, %v707
  %709 = vdwg.mxu0
  %710 = vmatpush.msra.mxu0 %v391
  %711 = vmatpush.msra.mxu0 %v389
  %712 = vmatpush.msra.mxu0 %v387
  %713 = vmatpush.msra.mxu0 %v385
  %714 = vmatpush.msra.mxu0 %v383
  %715 = vmatpush.msra.mxu0 %v381
  %716 = vmatpush.msra.mxu0 %v379
  %717 = vmatpush.msra.mxu0 %v377
  %718 = vmatpush.msra.mxu0 %v375
  %719 = vmatpush.msra.mxu0 %v373
  %720 = vmatpush.msra.mxu0 %v371
  %721 = vmatpush.msra.mxu0 %v369
  %722 = vmatpush.msra.mxu0 %v367
  %723 = vmatpush.msra.mxu0 %v365
  %724 = vmatpush.msra.mxu0 %v363
  %725 = vmatpush.msra.mxu0 %v361
  %726 = vmatmul.f32.gmra.mxu0 %v38
  %v727 = vpop.f32.mrf.mxu0
  %v728 = vadd.f32 %v708, %v727
  %729 = vdwg.mxu0
  %730 = vmatpush.msra.mxu0 %v423
  %731 = vmatpush.msra.mxu0 %v421
  %732 = vmatpush.msra.mxu0 %v419
  %733 = vmatpush.msra.mxu0 %v417
  %734 = vmatpush.msra.mxu0 %v415
  %735 = vmatpush.msra.mxu0 %v413
  %736 = vmatpush.msra.mxu0 %v411
  %737 = vmatpush.msra.mxu0 %v409
  %738 = vmatpush.msra.mxu0 %v407
  %739 = vmatpush.msra.mxu0 %v405
  %740 = vmatpush.msra.mxu0 %v403
  %741 = vmatpush.msra.mxu0 %v401
  %742 = vmatpush.msra.mxu0 %v399
  %743 = vmatpush.msra.mxu0 %v397
  %744 = vmatpush.msra.mxu0 %v395
  %745 = vmatpush.msra.mxu0 %v393
  %746 = vmatmul.f32.gmra.mxu0 %v39
  %v747 = vpop.f32.mrf.mxu0
  %v748 = vadd.f32 %v728, %v747
  %749 = vdwg.mxu0
  %v750 = vmax.f32 %v588, 0.0
  %v751 = vmax.f32 %v748, 0.0
  %v752 = vld [vmem:[%s3] sm:$0xff]
  %v753 = vld [vmem:[%s3 + $0x8] sm:$0xff]
  %v754 = vld [vmem:[%s3 + $0x10] sm:$0xff]
  %v755 = vld [vmem:[%s3 + $0x18] sm:$0xff]
  %v756 = vld [vmem:[%s3 + $0x20] sm:$0xff]
  %v757 = vld [vmem:[%s3 + $0x28] sm:$0xff]
  %v758 = vld [vmem:[%s3 + $0x30] sm:$0xff]
  %v759 = vld [vmem:[%s3 + $0x38] sm:$0xff]
  %v760 = vld [vmem:[%s3 + $0x40] sm:$0xff]
  %v761 = vld [vmem:[%s3 + $0x48] sm:$0xff]
  %v762 = vld [vmem:[%s3 + $0x50] sm:$0xff]
  %v763 = vld [vmem:[%s3 + $0x58] sm:$0xff]
  %v764 = vld [vmem:[%s3 + $0x60] sm:$0xff]
  %v765 = vld [vmem:[%s3 + $0x68] sm:$0xff]
  %v766 = vld [vmem:[%s3 + $0x70] sm:$0xff]
  %v767 = vld [vmem:[%s3 + $0x78] sm:$0xff]
  %v768 = vld [vmem:[%s3 + $0x80] sm:$0xff]
  %v769 = vld [vmem:[%s3 + $0x88] sm:$0xff]
  %v770 = vld [vmem:[%s3 + $0x90] sm:$0xff]
  %v771 = vld [vmem:[%s3 + $0x98] sm:$0xff]
  %v772 = vld [vmem:[%s3 + $0xa0] sm:$0xff]
  %v773 = vld [vmem:[%s3 + $0xa8] sm:$0xff]
  %v774 = vld [vmem:[%s3 + $0xb0] sm:$0xff]
  %v775 = vld [vmem:[%s3 + $0xb8] sm:$0xff]
  %v776 = vld [vmem:[%s3 + $0xc0] sm:$0xff]
  %v777 = vld [vmem:[%s3 + $0xc8] sm:$0xff]
  %v778 = vld [vmem:[%s3 + $0xd0] sm:$0xff]
  %v779 = vld [vmem:[%s3 + $0xd8] sm:$0xff]
  %v780 = vld [vmem:[%s3 + $0xe0] sm:$0xff]
  %v781 = vld [vmem:[%s3 + $0xe8] sm:$0xff]
  %v782 = vld [vmem:[%s3 + $0xf0] sm:$0xff]
  %v783 = vld [vmem:[%s3 + $0xf8] sm:$0xff]
  %v784 = vld [vmem:[%s4] sm:$0x1]
  %v786 = vperm.slane %v784, 0
  %788 = vmatpush.msra.mxu0 %v767
  %789 = vmatpush.msra.mxu0 %v766
  %790 = vmatpush.msra.mxu0 %v765
  %791 = vmatpush.msra.mxu0 %v764
  %792 = vmatpush.msra.mxu0 %v763
  %793 = vmatpush.msra.mxu0 %v762
  %794 = vmatpush.msra.mxu0 %v761
  %795 = vmatpush.msra.mxu0 %v760
  %796 = vmatpush.msra.mxu0 %v759
  %797 = vmatpush.msra.mxu0 %v758
  %798 = vmatpush.msra.mxu0 %v757
  %799 = vmatpush.msra.mxu0 %v756
  %800 = vmatpush.msra.mxu0 %v755
  %801 = vmatpush.msra.mxu0 %v754
  %802 = vmatpush.msra.mxu0 %v753
  %803 = vmatpush.msra.mxu0 %v752
  %804 = vmatmul.f32.gmra.mxu0 %v750
  %v805 = vpop.f32.mrf.mxu0
  %v806 = vadd.f32 %v786, %v805
  %807 = vdwg.mxu0
  %808 = vmatpush.msra.mxu0 %v783
  %809 = vmatpush.msra.mxu0 %v782
  %810 = vmatpush.msra.mxu0 %v781
  %811 = vmatpush.msra.mxu0 %v780
  %812 = vmatpush.msra.mxu0 %v779
  %813 = vmatpush.msra.mxu0 %v778
  %814 = vmatpush.msra.mxu0 %v777
  %815 = vmatpush.msra.mxu0 %v776
  %816 = vmatpush.msra.mxu0 %v775
  %817 = vmatpush.msra.mxu0 %v774
  %818 = vmatpush.msra.mxu0 %v773
  %819 = vmatpush.msra.mxu0 %v772
  %820 = vmatpush.msra.mxu0 %v771
  %821 = vmatpush.msra.mxu0 %v770
  %822 = vmatpush.msra.mxu0 %v769
  %823 = vmatpush.msra.mxu0 %v768
  %824 = vmatmul.f32.gmra.mxu0 %v751
  %v825 = vpop.f32.mrf.mxu0
  %v826 = vadd.f32 %v806, %v825
  %827 = vdwg.mxu0
  %v828 = vmax.f32 %v826, 0.0
  %v829 = vld [vmem:[%s5] sm:$0xff]
  %v830 = vld [vmem:[%s5 + $0x8] sm:$0xff]
  %v831 = vld [vmem:[%s5 + $0x10] sm:$0xff]
  %v832 = vld [vmem:[%s5 + $0x18] sm:$0xff]
  %v833 = vld [vmem:[%s5 + $0x20] sm:$0xff]
  %v834 = vld [vmem:[%s5 + $0x28] sm:$0xff]
  %v835 = vld [vmem:[%s5 + $0x30] sm:$0xff]
  %v836 = vld [vmem:[%s5 + $0x38] sm:$0xff]
  %v837 = vld [vmem:[%s6] sm:$0x1]
  %v839 = vperm.slane %v837, 0
  %vm841 = vcmask 523264
  %v843 = vsel %vm841, %v828, 0
  %845 = vmatpush.msra.mxu0 0.0
  %846 = vmatpush.msra.mxu0 0.0
  %847 = vmatpush.msra.mxu0 0.0
  %848 = vmatpush.msra.mxu0 0.0
  %849 = vmatpush.msra.mxu0 0.0
  %850 = vmatpush.msra.mxu0 0.0
  %851 = vmatpush.msra.mxu0 0.0
  %852 = vmatpush.msra.mxu0 0.0
  %853 = vmatpush.msra.mxu0 %v836
  %854 = vmatpush.msra.mxu0 %v835
  %855 = vmatpush.msra.mxu0 %v834
  %856 = vmatpush.msra.mxu0 %v833
  %857 = vmatpush.msra.mxu0 %v832
  %858 = vmatpush.msra.mxu0 %v831
  %859 = vmatpush.msra.mxu0 %v830
  %860 = vmatpush.msra.mxu0 %v829
  %861 = vmatmul.f32.gmra.mxu0 %v843
  %v862 = vpop.f32.mrf.mxu0
  %v863 = vadd.f32 %v839, %v862
  %864 = vdwg.mxu0
  %v865 = vmax.f32 %v863, 0.0
  %v866 = vld [vmem:[%s7] sm:$0xff]
  %v867 = vld [vmem:[%s7 + $0x8] sm:$0xff]
  %v868 = vld [vmem:[%s8] sm:$0x1]
  %v870 = vperm.slane %v868, 0
  %vm872 = vcmask 130048
  %v874 = vsel %vm872, %v865, 0
  %876 = vmatpush.msra.mxu0 0.0
  %877 = vmatpush.msra.mxu0 0.0
  %878 = vmatpush.msra.mxu0 0.0
  %879 = vmatpush.msra.mxu0 0.0
  %880 = vmatpush.msra.mxu0 0.0
  %881 = vmatpush.msra.mxu0 0.0
  %882 = vmatpush.msra.mxu0 0.0
  %883 = vmatpush.msra.mxu0 0.0
  %884 = vmatpush.msra.mxu0 0.0
  %885 = vmatpush.msra.mxu0 0.0
  %886 = vmatpush.msra.mxu0 0.0
  %887 = vmatpush.msra.mxu0 0.0
  %888 = vmatpush.msra.mxu0 0.0
  %889 = vmatpush.msra.mxu0 0.0
  %890 = vmatpush.msra.mxu0 %v867
  %891 = vmatpush.msra.mxu0 %v866
  %892 = vmatmul.f32.gmra.mxu0 %v874
  %v893 = vpop.f32.mrf.mxu0
  %v894 = vadd.f32 %v870, %v893
  %895 = vdwg.mxu0
  %896 = vmax.xlane.f32.xlu0 %v894
  %v897 = vpop.xlane.xlu0 %896
  %v898 = vsub.f32 %v894, %v897
  %v899 = vmul.f32 %v898, 1.442695
  %v900 = vpow.pop %v899
  %901 = vadd.xlane.f32.xlu0 %v900
  %v902 = vpop.xlane.xlu0 %901
  %v903 = vrcp.pop %v902
  %v904 = vmul.f32 %v902, %v903
  %v905 = vsub.f32 1.0, %v904
  %v906 = vmul.f32 %v903, %v905
  %v907 = vadd.f32 %v903, %v906
  %vm908 = vweird.f32 %v902
  %vm909 = vweird.f32 %v903
  %vm910 = vmor %vm908, %vm909
  %v911 = vsel %vm910, %v903, %v907
  %v912 = vand.u32 2147483647, %v902
  %vm913 = vcmp.eq.f32.partialorder %v912, 8.507059e+37
  %v914 = vand.u32 %v902, 2147483648
  %v915 = vor.u32 1.1754944e-38, %v914
  %v916 = vsel %vm913, %v915, %v911
  %v917 = vmul.f32 %v900, %v916
  %918 = vst [vmem:[%s9] sm:$0xff] %v917
  // Predicated region
  $region38: #{mlp_head.1} parent=0 // pred_check
    _
  $region39: #{mlp_head.1} parent=0 // pred_check_branch
    %920 = sbr.rel (0) target = $region41
  $region40: #{mlp_head.1} parent=0 // pred_region
    _
  $region41: #{mlp_head.1} parent=0 // pred_fallthru
    _
  // Predicated region
  $region42: #{mlp_head.1} parent=0 // pred_check
    _
  $region43: #{mlp_head.1} parent=0 // pred_check_branch
    %922 = sbr.rel (0) target = $region45
  $region44: #{mlp_head.1} parent=0 // pred_region
    _
  $region45: #{mlp_head.1} parent=0 // pred_fallthru
    _

</llo_original>
